<compile_context>
chip_gen: v6e
topology: v6e:2x2x1
jax: 0.10.0
libtpu: 0.0.40
codegen_flags: <defaults>
</compile_context>

<pallas_src>
import functools

import jax
import jax.numpy as jnp
from jax.experimental import pallas as pl
from jax.experimental.pallas import tpu as pltpu


def _round_up(x, m):
    return ((x + m - 1) // m) * m


# ---------------------------------------------------------------------------
# Kernel: fused global-average-pool + classifier Linear (one batch tile)
# ---------------------------------------------------------------------------

def _head_kernel(x_ref, w_ref, b_ref, emb_ref, y_ref, *, spatial_axis, inv_p):
    """x_ref  : (tb, P, C) [NHWC path] or (tb, C, P) [NCHW path] feature-map tile
       w_ref  : (C, Npad)  classifier weight, pre-transposed to [in, out], lane-padded
       b_ref  : (1, Npad)  classifier bias, lane-padded
       emb_ref: (tb, C)    visual embedding (global average pool)
       y_ref  : (tb, Npad) classifier logits (padded columns come from zero weights)
    """
    # f32-accumulated sum: no materialized f32 copy of the (possibly bf16) tile;
    # sublane/lane reduce runs on VPU/XLU, keeping the MXU free for the matmul.
    emb = jnp.sum(x_ref[...], axis=spatial_axis, dtype=jnp.float32) * inv_p
    emb_ref[...] = emb.astype(emb_ref.dtype)
    y = jnp.dot(emb, w_ref[...], preferred_element_type=jnp.float32) + b_ref[...]
    y_ref[...] = y.astype(y_ref.dtype)


# ---------------------------------------------------------------------------
# Wrapper
# ---------------------------------------------------------------------------

def _vmem_limit_bytes():
    """Generation-aware scoped-VMEM limit (~75% of physical, capped at 96 MiB)."""
    phys = 64 * 1024 * 1024  # conservative default (v7x per-TC VMEM)
    try:
        info = pltpu.get_tpu_info()
        phys = int(getattr(info, "vmem_capacity_bytes", phys))
    except Exception:
        pass
    return min((phys * 3) // 4, 96 * 1024 * 1024)


class ImageEncoderPallas:
    """Pallas port of ImageEncoder's translatable tail (GAP + classifier Linear)."""

    def __init__(self, visual_features, image_num_classes, key=None):
        self.visual_features = visual_features
        self.img_num_classes = image_num_classes
        self.n_pad = _round_up(image_num_classes, 128)   # lane-dense logits / full MXU tile

        key = key if key is not None else jax.random.PRNGKey(42)
        kw, kb = jax.random.split(key)
        bound = 1.0 / (visual_features ** 0.5)           # nn.Linear default uniform bound
        w = jax.random.uniform(kw, (image_num_classes, visual_features),
                               jnp.float32, -bound, bound)         # torch layout [out, in]
        b = jax.random.uniform(kb, (image_num_classes,), jnp.float32, -bound, bound)

        # Pre-transpose once + zero-pad the class dimension to a multiple of 128.
        self.w_t = jnp.zeros((visual_features, self.n_pad), jnp.float32).at[
            :, :image_num_classes].set(w.T)                          # (C, Npad)
        self.b = jnp.zeros((1, self.n_pad), jnp.float32).at[
            0, :image_num_classes].set(b)                            # (1, Npad)

    def __call__(self, feat_map, data_format="NHWC"):
        """feat_map: final conv-trunk feature map.
           NHWC (B, h, w, C)  -> preferred, channels lane-dense, zero-copy reshape.
           NCHW (B, C, h, w)  -> torch layout, consumed directly (no HBM transpose)."""
        if data_format == "NHWC":
            B, hs, ws, C = feat_map.shape
            P = hs * ws
            x = feat_map.reshape(B, P, C)        # free reshape: spatial->sublanes, C->lanes
            spatial_axis = 1
            sub_dim, lane_dim = P, C
        elif data_format == "NCHW":
            B, C, hs, ws = feat_map.shape
            P = hs * ws
            x = feat_map.reshape(B, C, P)        # no HBM transpose; GAP over lanes in-kernel
            spatial_axis = 2
            sub_dim, lane_dim = C, P
        else:
            raise ValueError(f"unknown data_format {data_format!r}")
        assert C == self.visual_features

        n_pad = self.n_pad
        itemsize = jnp.dtype(x.dtype).itemsize
        emb_dtype = x.dtype

        # ------- VMEM-aware batch-tile selection (double-buffered pipeline) -------
        vmem_limit = _vmem_limit_bytes()
        fixed = 2 * (C * n_pad * 4 + 8 * n_pad * 4) + (1 << 20)     # weight/bias + slack
        budget = max(vmem_limit - fixed, 1 << 20)

        def tile_bytes(tb):
            x_blk = tb * _round_up(sub_dim, 8) * _round_up(lane_dim, 128) * itemsize
            emb_blk = tb * _round_up(C, 128) * itemsize
            y_blk = tb * n_pad * 4
            return 2 * (x_blk + emb_blk + y_blk)                    # 2x: double buffering

        b_pad = _round_up(B, 8)
        tb = 8
        for cand in (512, 256, 128, 64, 32, 16, 8):
            if cand <= b_pad and tile_bytes(cand) <= budget:
                tb = cand
                break
        # Keep at least 2 grid steps when the batch allows it (v7x dual-TC sharding).
        if b_pad >= 16:
            tb = min(tb, max(8, ((b_pad // 2) // 8) * 8))

        B_total = _round_up(B, tb)
        if B_total != B:
            # Ragged / tiny batches: zero-pad onto the pipelined path, slice after.
            x = jnp.pad(x, [(0, B_total - B)] + [(0, 0)] * (x.ndim - 1))

        grid = (B_total // tb,)
        cost = pl.CostEstimate(
            flops=int(2 * B_total * C * n_pad),
            transcendentals=0,
            bytes_accessed=int(B_total * P * C * itemsize
                               + C * n_pad * 4 + n_pad * 4
                               + B_total * C * jnp.dtype(emb_dtype).itemsize
                               + B_total * n_pad * 4))

        x_block = (tb, P, C) if data_format == "NHWC" else (tb, C, P)

        emb_pad, y_pad = pl.pallas_call(
            functools.partial(_head_kernel, spatial_axis=spatial_axis, inv_p=1.0 / P),
            out_shape=(jax.ShapeDtypeStruct((B_total, C), emb_dtype),
                       jax.ShapeDtypeStruct((B_total, n_pad), jnp.float32)),
            grid=grid,
            in_specs=[
                pl.BlockSpec(x_block, lambda i: (i, 0, 0)),
                pl.BlockSpec((C, n_pad), lambda i: (0, 0)),
                pl.BlockSpec((1, n_pad), lambda i: (0, 0)),
            ],
            out_specs=(
                pl.BlockSpec((tb, C), lambda i: (i, 0)),
                pl.BlockSpec((tb, n_pad), lambda i: (i, 0)),
            ),
            compiler_params=pltpu.CompilerParams(
                dimension_semantics=("parallel",),
                vmem_limit_bytes=int(vmem_limit)),
            cost_estimate=cost,
        )(x, self.w_t, self.b)

        emb = emb_pad[:B]
        y = y_pad[:B, :self.img_num_classes]
        return emb, y


# ---------------------------------------------------------------------------
# Pure-JAX reference (mirrors the PyTorch forward: GAP -> flatten -> Linear)
# ---------------------------------------------------------------------------

def _ref(enc, feat_map, data_format="NHWC"):
    if data_format == "NHWC":
        emb = feat_map.astype(jnp.float32).mean(axis=(1, 2))
    else:
        emb = feat_map.astype(jnp.float32).mean(axis=(2, 3))
    w = enc.w_t[:, :enc.img_num_classes]
    b = enc.b[:, :enc.img_num_classes]
    y = jnp.dot(emb, w, preferred_element_type=jnp.float32) + b
    return emb.astype(feat_map.dtype), y


if __name__ == "__main__":
    visual_features, n_class, spatial = 64, 16, 8
    key = jax.random.PRNGKey(0)
    kx1, kx2, kp = jax.random.split(key, 3)
    enc = ImageEncoderPallas(visual_features, n_class, key=kp)

    cases = (
        ("nhwc_small", "NHWC",
         jax.random.normal(kx1, (2, spatial, spatial, visual_features), jnp.float32)),
        ("nhwc_batched", "NHWC",
         jax.random.normal(kx2, (16, spatial, spatial, visual_features), jnp.float32)),
        ("nchw_torch_layout", "NCHW",
         jax.random.normal(kx1, (2, visual_features, spatial, spatial), jnp.float32)),
    )

    for name, fmt, x in cases:
        emb, y = enc(x, data_format=fmt)
        emb = jax.block_until_ready(emb)
        y = jax.block_until_ready(y)
        emb_ref, y_ref = _ref(enc, x, fmt)
        assert emb.shape == emb_ref.shape, (name, emb.shape, emb_ref.shape)
        assert y.shape == y_ref.shape, (name, y.shape, y_ref.shape)
        assert jnp.allclose(emb, emb_ref, atol=1e-5, rtol=1e-5), (name, "visual_embedding")
        # Looser tolerance: MXU f32 matmul path may differ from XLA's default precision.
        assert jnp.allclose(y, y_ref, atol=5e-3, rtol=5e-3), (name, "classifier logits")

    print("KERNEL_OK")
</pallas_src>

<mosaic_0001>
module attributes {stable_mosaic.version = 11 : i64} {
  func.func @_head_kernel(%arg0: i32, %arg1: memref<8x64x64xf32, #tpu.memory_space<vmem>>, %arg2: memref<64x128xf32, #tpu.memory_space<vmem>>, %arg3: memref<1x128xf32, #tpu.memory_space<vmem>>, %arg4: memref<8x64xf32, #tpu.memory_space<vmem>>, %arg5: memref<8x128xf32, #tpu.memory_space<vmem>>) attributes {dimension_semantics = [#tpu.dimension_semantics<parallel>], iteration_bounds = array<i64: 1>, scalar_prefetch = 0 : i64, scratch_operands = 0 : i64, tpu.core_type = #tpu.core_type<tc>, window_params = [{transform_indices = @transform_0, window_bounds = array<i64: 8, 64, 64>}, {pipeline_mode = #tpu.pipeline_mode<synchronous>, transform_indices = @transform_1, window_bounds = array<i64: 64, 128>}, {pipeline_mode = #tpu.pipeline_mode<synchronous>, transform_indices = @transform_2, window_bounds = array<i64: 1, 128>}, {transform_indices = @transform_3, window_bounds = array<i64: 8, 64>}, {transform_indices = @transform_4, window_bounds = array<i64: 8, 128>}]} {
    %c0 = arith.constant 0 : index
    %c0_0 = arith.constant 0 : index
    %c0_1 = arith.constant 0 : index
    %0 = vector.load %arg1[%c0, %c0_0, %c0_1] : memref<8x64x64xf32, #tpu.memory_space<vmem>>, vector<8x64x64xf32>
    %cst = arith.constant dense<0.000000e+00> : vector<8x64xf32>
    %1 = vector.multi_reduction <add>, %0, %cst [1] : vector<8x64x64xf32> to vector<8x64xf32>
    %cst_2 = arith.constant 1.562500e-02 : f32
    %2 = vector.broadcast %cst_2 : f32 to vector<8x64xf32>
    %3 = arith.mulf %1, %2 : vector<8x64xf32>
    %c0_3 = arith.constant 0 : index
    %c0_4 = arith.constant 0 : index
    %4 = vector.load %arg4[%c0_3, %c0_4] : memref<8x64xf32, #tpu.memory_space<vmem>>, vector<8x64xf32>
    tpu.vector_store %arg4[%c0_3, %c0_4], %3 {strides = array<i32>} : memref<8x64xf32, #tpu.memory_space<vmem>>, vector<8x64xf32>,
    %c0_5 = arith.constant 0 : index
    %c0_6 = arith.constant 0 : index
    %5 = vector.load %arg2[%c0_5, %c0_6] : memref<64x128xf32, #tpu.memory_space<vmem>>, vector<64x128xf32>
    %cst_7 = arith.constant dense<0.000000e+00> : vector<8x128xf32>
    %6 = tpu.matmul %3, %5, %cst_7 {dimension_numbers = #tpu.dot_dimension_numbers<[1], [0], [0], [1], [0, 0, 1, 1], [], []>} : vector<8x64xf32>, vector<64x128xf32>, vector<8x128xf32> -> vector<8x128xf32>
    %c0_8 = arith.constant 0 : index
    %c0_9 = arith.constant 0 : index
    %7 = vector.load %arg3[%c0_8, %c0_9] : memref<1x128xf32, #tpu.memory_space<vmem>>, vector<1x128xf32>
    %8 = vector.broadcast %7 : vector<1x128xf32> to vector<8x128xf32>
    %9 = arith.addf %6, %8 : vector<8x128xf32>
    %c0_10 = arith.constant 0 : index
    %c0_11 = arith.constant 0 : index
    %10 = vector.load %arg5[%c0_10, %c0_11] : memref<8x128xf32, #tpu.memory_space<vmem>>, vector<8x128xf32>
    tpu.vector_store %arg5[%c0_10, %c0_11], %9 {strides = array<i32>} : memref<8x128xf32, #tpu.memory_space<vmem>>, vector<8x128xf32>,
    return
  }
  func.func @transform_0(%arg0: i32) -> (i32, i32, i32) {
    %c0_i32 = arith.constant 0 : i32
    %c0_i32_0 = arith.constant 0 : i32
    %c0_i32_1 = arith.constant 0 : i32
    return %arg0, %c0_i32, %c0_i32_0 : i32, i32, i32
  }
  func.func @transform_1(%arg0: i32) -> (i32, i32) {
    %c0_i32 = arith.constant 0 : i32
    %c0_i32_0 = arith.constant 0 : i32
    %c0_i32_1 = arith.constant 0 : i32
    return %c0_i32, %c0_i32_0 : i32, i32
  }
  func.func @transform_2(%arg0: i32) -> (i32, i32) {
    %c0_i32 = arith.constant 0 : i32
    %c0_i32_0 = arith.constant 0 : i32
    %c0_i32_1 = arith.constant 0 : i32
    return %c0_i32, %c0_i32_0 : i32, i32
  }
  func.func @transform_3(%arg0: i32) -> (i32, i32) {
    %c0_i32 = arith.constant 0 : i32
    %c0_i32_0 = arith.constant 0 : i32
    return %arg0, %c0_i32 : i32, i32
  }
  func.func @transform_4(%arg0: i32) -> (i32, i32) {
    %c0_i32 = arith.constant 0 : i32
    %c0_i32_0 = arith.constant 0 : i32
    return %arg0, %c0_i32 : i32, i32
  }
}

</mosaic_0001>

<llo_original>
// kernel: tpu_custom_call.1
$region0: #{tpu_custom_call.1}
  #allocation0 [shape = 'u32[]', space=smem, size = 0x4, offset = 0x4, fixed_abs, tag = 'smem constant byte address 0x4 - core index']
  #allocation1 [shape = 'u32[144,128]{1,0:T(1,128)}', space=vmem, size = 0x12000, scoped, tag = 'internal scratch']
  %s0 = inlined_call_operand.hbm [shape: f32[8,64,64], index: 0, kind: input, shape index: {}]
  %s1 = inlined_call_operand.hbm [shape: f32[64,128], index: 1, kind: input, shape index: {}]
  %s2 = inlined_call_operand.vmem [shape: f32[1,128], index: 2, kind: input, shape index: {}]
  %s3 = inlined_call_operand.hbm [shape: f32[8,64], index: 3, kind: output, shape index: {0}]
  %s4 = inlined_call_operand.hbm [shape: f32[8,128], index: 4, kind: output, shape index: {1}]
  %5 = xla_tuple %s3, %s4
  %s6 = sld [smem:[#allocation0]]
  $region38: #{tpu_custom_call.1} parent=0
    _
  %s8 = ssub.s32 1, %s6
  %s9 = scalar_select 0, %s8, %s6
  $region1: #{tpu_custom_call.1} parent=0
    #allocation2 [shape = 'u8[262144]{0}', space=vmem, size = 0x40000, scoped, tag = 'input window, operand 0, single buffered']
    #allocation3 [shape = 's32[1]{0}', space=sflag, size = 0x4, scoped, tag = 'scoped memory for tpu_custom_call.1']
    #allocation4 [shape = 's32[1]{0}', space=sflag, size = 0x4, scoped, tag = 'scoped memory for tpu_custom_call.1']
    #allocation5 [shape = 'u8[32768]{0}', space=vmem, size = 0x8000, scoped, tag = 'input window, operand 1, single buffered']
    #allocation6 [shape = 's32[1]{0}', space=sflag, size = 0x4, scoped, tag = 'scoped memory for tpu_custom_call.1']
    #allocation7 [shape = 'u8[4096]{0}', space=vmem, size = 0x1000, scoped, tag = 'output window, operand 0, single buffered']
    #allocation8 [shape = 'u8[4096]{0}', space=vmem, size = 0x1000, scoped, tag = 'output window, operand 1, single buffered']
    #allocation9 [shape = 's32[1]{0}', space=sflag, size = 0x4, scoped, tag = 'scoped memory for tpu_custom_call.1']
    %10 = vsyncpa [#allocation3], 0
    %11 = vsyncpa [#allocation6], 0
    %12 = vsyncpa [#allocation4], 0
    %13 = vsyncpa [#allocation9], 0
    // Predicated region
    $region2: #{tpu_custom_call.1} parent=1 // pred_check
      _
    $region3: #{tpu_custom_call.1} parent=1 // pred_check_branch
      %15 = sbr.rel (0) target = $region5
    $region4: #{tpu_custom_call.1} parent=1 // pred_region
      %s17 = ssub.s32 8192, 8192
      %18 = vsyncadd [#allocation3], %s17
      %s19 = sshll.u32 [#allocation2], 4
      %s20 = int_to_ptr.vmem [resolvable:$true] %s19
      %25 = dma.hbm_to_vmem [thread:$0]  %s0, 8192, %s20, [#allocation3], 128, 128, 8
    $region5: #{tpu_custom_call.1} parent=1 // pred_fallthru
      _
    // Predicated region
    $region6: #{tpu_custom_call.1} parent=1 // pred_check
      _
    $region7: #{tpu_custom_call.1} parent=1 // pred_check_branch
      %27 = sbr.rel (0) target = $region9
    $region8: #{tpu_custom_call.1} parent=1 // pred_region
      %s29 = ssub.s32 1024, 1024
      %30 = vsyncadd [#allocation6], %s29
      %s31 = sshll.u32 [#allocation5], 4
      %s32 = int_to_ptr.vmem [resolvable:$true] %s31
      %37 = dma.hbm_to_vmem [thread:$0]  %s1, 1024, %s32, [#allocation6], 128, 128, 8
    $region9: #{tpu_custom_call.1} parent=1 // pred_fallthru
      _
    // Predicated region
    $region10: #{tpu_custom_call.1} parent=1 // pred_check
      _
    $region11: #{tpu_custom_call.1} parent=1 // pred_check_branch
      %39 = sbr.rel (0) target = $region13
    $region12: #{tpu_custom_call.1} parent=1 // pred_region
      _
    $region13: #{tpu_custom_call.1} parent=1 // pred_fallthru
      _
    // Predicated region
    $region14: #{tpu_custom_call.1} parent=1 // pred_check
      _
    $region15: #{tpu_custom_call.1} parent=1 // pred_check_branch
      %41 = sbr.rel (0) target = $region17
    $region16: #{tpu_custom_call.1} parent=1 // pred_region
      %42 = dma.done [#allocation3], 8192
    $region17: #{tpu_custom_call.1} parent=1 // pred_fallthru
      _
    // Predicated region
    $region18: #{tpu_custom_call.1} parent=1 // pred_check
      _
    $region19: #{tpu_custom_call.1} parent=1 // pred_check_branch
      %44 = sbr.rel (0) target = $region21
    $region20: #{tpu_custom_call.1} parent=1 // pred_region
      %45 = dma.done [#allocation6], 1024
    $region21: #{tpu_custom_call.1} parent=1 // pred_fallthru
      _
    %v46 = vld [vmem:[#allocation2] sm:$0xff]
    %v47 = vld [vmem:[#allocation2 + $0x8] sm:$0xff]
    %v48 = vld [vmem:[#allocation2 + $0x10] sm:$0xff]
    %v49 = vld [vmem:[#allocation2 + $0x18] sm:$0xff]
    %v50 = vld [vmem:[#allocation2 + $0x20] sm:$0xff]
    %v51 = vld [vmem:[#allocation2 + $0x28] sm:$0xff]
    %v52 = vld [vmem:[#allocation2 + $0x30] sm:$0xff]
    %v53 = vld [vmem:[#allocation2 + $0x38] sm:$0xff]
    %v54 = vld [vmem:[#allocation2 + $0x40] sm:$0xff]
    %v55 = vld [vmem:[#allocation2 + $0x48] sm:$0xff]
    %v56 = vld [vmem:[#allocation2 + $0x50] sm:$0xff]
    %v57 = vld [vmem:[#allocation2 + $0x58] sm:$0xff]
    %v58 = vld [vmem:[#allocation2 + $0x60] sm:$0xff]
    %v59 = vld [vmem:[#allocation2 + $0x68] sm:$0xff]
    %v60 = vld [vmem:[#allocation2 + $0x70] sm:$0xff]
    %v61 = vld [vmem:[#allocation2 + $0x78] sm:$0xff]
    %v62 = vld [vmem:[#allocation2 + $0x80] sm:$0xff]
    %v63 = vld [vmem:[#allocation2 + $0x88] sm:$0xff]
    %v64 = vld [vmem:[#allocation2 + $0x90] sm:$0xff]
    %v65 = vld [vmem:[#allocation2 + $0x98] sm:$0xff]
    %v66 = vld [vmem:[#allocation2 + $0xa0] sm:$0xff]
    %v67 = vld [vmem:[#allocation2 + $0xa8] sm:$0xff]
    %v68 = vld [vmem:[#allocation2 + $0xb0] sm:$0xff]
    %v69 = vld [vmem:[#allocation2 + $0xb8] sm:$0xff]
    %v70 = vld [vmem:[#allocation2 + $0xc0] sm:$0xff]
    %v71 = vld [vmem:[#allocation2 + $0xc8] sm:$0xff]
    %v72 = vld [vmem:[#allocation2 + $0xd0] sm:$0xff]
    %v73 = vld [vmem:[#allocation2 + $0xd8] sm:$0xff]
    %v74 = vld [vmem:[#allocation2 + $0xe0] sm:$0xff]
    %v75 = vld [vmem:[#allocation2 + $0xe8] sm:$0xff]
    %v76 = vld [vmem:[#allocation2 + $0xf0] sm:$0xff]
    %v77 = vld [vmem:[#allocation2 + $0xf8] sm:$0xff]
    %v78 = vld [vmem:[#allocation2 + $0x100] sm:$0xff]
    %v79 = vld [vmem:[#allocation2 + $0x108] sm:$0xff]
    %v80 = vld [vmem:[#allocation2 + $0x110] sm:$0xff]
    %v81 = vld [vmem:[#allocation2 + $0x118] sm:$0xff]
    %v82 = vld [vmem:[#allocation2 + $0x120] sm:$0xff]
    %v83 = vld [vmem:[#allocation2 + $0x128] sm:$0xff]
    %v84 = vld [vmem:[#allocation2 + $0x130] sm:$0xff]
    %v85 = vld [vmem:[#allocation2 + $0x138] sm:$0xff]
    %v86 = vld [vmem:[#allocation2 + $0x140] sm:$0xff]
    %v87 = vld [vmem:[#allocation2 + $0x148] sm:$0xff]
    %v88 = vld [vmem:[#allocation2 + $0x150] sm:$0xff]
    %v89 = vld [vmem:[#allocation2 + $0x158] sm:$0xff]
    %v90 = vld [vmem:[#allocation2 + $0x160] sm:$0xff]
    %v91 = vld [vmem:[#allocation2 + $0x168] sm:$0xff]
    %v92 = vld [vmem:[#allocation2 + $0x170] sm:$0xff]
    %v93 = vld [vmem:[#allocation2 + $0x178] sm:$0xff]
    %v94 = vld [vmem:[#allocation2 + $0x180] sm:$0xff]
    %v95 = vld [vmem:[#allocation2 + $0x188] sm:$0xff]
    %v96 = vld [vmem:[#allocation2 + $0x190] sm:$0xff]
    %v97 = vld [vmem:[#allocation2 + $0x198] sm:$0xff]
    %v98 = vld [vmem:[#allocation2 + $0x1a0] sm:$0xff]
    %v99 = vld [vmem:[#allocation2 + $0x1a8] sm:$0xff]
    %v100 = vld [vmem:[#allocation2 + $0x1b0] sm:$0xff]
    %v101 = vld [vmem:[#allocation2 + $0x1b8] sm:$0xff]
    %v102 = vld [vmem:[#allocation2 + $0x1c0] sm:$0xff]
    %v103 = vld [vmem:[#allocation2 + $0x1c8] sm:$0xff]
    %v104 = vld [vmem:[#allocation2 + $0x1d0] sm:$0xff]
    %v105 = vld [vmem:[#allocation2 + $0x1d8] sm:$0xff]
    %v106 = vld [vmem:[#allocation2 + $0x1e0] sm:$0xff]
    %v107 = vld [vmem:[#allocation2 + $0x1e8] sm:$0xff]
    %v108 = vld [vmem:[#allocation2 + $0x1f0] sm:$0xff]
    %v109 = vld [vmem:[#allocation2 + $0x1f8] sm:$0xff]
    %vm110 = vcmask 523264
    %v111 = vsel %vm110, %v46, 0.0
    %v112 = vsel %vm110, %v47, 0.0
    %v113 = vadd.f32 %v111, %v112
    %v114 = vsel %vm110, %v48, 0.0
    %v115 = vadd.f32 %v113, %v114
    %v116 = vsel %vm110, %v49, 0.0
    %v117 = vadd.f32 %v115, %v116
    %v118 = vsel %vm110, %v50, 0.0
    %v119 = vadd.f32 %v117, %v118
    %v120 = vsel %vm110, %v51, 0.0
    %v121 = vadd.f32 %v119, %v120
    %v122 = vsel %vm110, %v52, 0.0
    %v123 = vadd.f32 %v121, %v122
    %v124 = vsel %vm110, %v53, 0.0
    %v125 = vadd.f32 %v123, %v124
    %v126 = vrot.slane %v125, 4
    %v127 = vadd.f32 %v125, %v126
    %v128 = vrot.slane %v127, 2
    %v129 = vadd.f32 %v127, %v128
    %v130 = vrot.slane %v129, 1
    %v131 = vadd.f32 %v129, %v130
    %v132 = vsel %vm110, %v54, 0.0
    %v133 = vsel %vm110, %v55, 0.0
    %v134 = vadd.f32 %v132, %v133
    %v135 = vsel %vm110, %v56, 0.0
    %v136 = vadd.f32 %v134, %v135
    %v137 = vsel %vm110, %v57, 0.0
    %v138 = vadd.f32 %v136, %v137
    %v139 = vsel %vm110, %v58, 0.0
    %v140 = vadd.f32 %v138, %v139
    %v141 = vsel %vm110, %v59, 0.0
    %v142 = vadd.f32 %v140, %v141
    %v143 = vsel %vm110, %v60, 0.0
    %v144 = vadd.f32 %v142, %v143
    %v145 = vsel %vm110, %v61, 0.0
    %v146 = vadd.f32 %v144, %v145
    %v147 = vrot.slane %v146, 4
    %v148 = vadd.f32 %v146, %v147
    %v149 = vrot.slane %v148, 2
    %v150 = vadd.f32 %v148, %v149
    %v151 = vrot.slane %v150, 1
    %v152 = vadd.f32 %v150, %v151
    %v153 = vsel %vm110, %v62, 0.0
    %v154 = vsel %vm110, %v63, 0.0
    %v155 = vadd.f32 %v153, %v154
    %v156 = vsel %vm110, %v64, 0.0
    %v157 = vadd.f32 %v155, %v156
    %v158 = vsel %vm110, %v65, 0.0
    %v159 = vadd.f32 %v157, %v158
    %v160 = vsel %vm110, %v66, 0.0
    %v161 = vadd.f32 %v159, %v160
    %v162 = vsel %vm110, %v67, 0.0
    %v163 = vadd.f32 %v161, %v162
    %v164 = vsel %vm110, %v68, 0.0
    %v165 = vadd.f32 %v163, %v164
    %v166 = vsel %vm110, %v69, 0.0
    %v167 = vadd.f32 %v165, %v166
    %v168 = vrot.slane %v167, 4
    %v169 = vadd.f32 %v167, %v168
    %v170 = vrot.slane %v169, 2
    %v171 = vadd.f32 %v169, %v170
    %v172 = vrot.slane %v171, 1
    %v173 = vadd.f32 %v171, %v172
    %v174 = vsel %vm110, %v70, 0.0
    %v175 = vsel %vm110, %v71, 0.0
    %v176 = vadd.f32 %v174, %v175
    %v177 = vsel %vm110, %v72, 0.0
    %v178 = vadd.f32 %v176, %v177
    %v179 = vsel %vm110, %v73, 0.0
    %v180 = vadd.f32 %v178, %v179
    %v181 = vsel %vm110, %v74, 0.0
    %v182 = vadd.f32 %v180, %v181
    %v183 = vsel %vm110, %v75, 0.0
    %v184 = vadd.f32 %v182, %v183
    %v185 = vsel %vm110, %v76, 0.0
    %v186 = vadd.f32 %v184, %v185
    %v187 = vsel %vm110, %v77, 0.0
    %v188 = vadd.f32 %v186, %v187
    %v189 = vrot.slane %v188, 4
    %v190 = vadd.f32 %v188, %v189
    %v191 = vrot.slane %v190, 2
    %v192 = vadd.f32 %v190, %v191
    %v193 = vrot.slane %v192, 1
    %v194 = vadd.f32 %v192, %v193
    %v195 = vsel %vm110, %v78, 0.0
    %v196 = vsel %vm110, %v79, 0.0
    %v197 = vadd.f32 %v195, %v196
    %v198 = vsel %vm110, %v80, 0.0
    %v199 = vadd.f32 %v197, %v198
    %v200 = vsel %vm110, %v81, 0.0
    %v201 = vadd.f32 %v199, %v200
    %v202 = vsel %vm110, %v82, 0.0
    %v203 = vadd.f32 %v201, %v202
    %v204 = vsel %vm110, %v83, 0.0
    %v205 = vadd.f32 %v203, %v204
    %v206 = vsel %vm110, %v84, 0.0
    %v207 = vadd.f32 %v205, %v206
    %v208 = vsel %vm110, %v85, 0.0
    %v209 = vadd.f32 %v207, %v208
    %v210 = vrot.slane %v209, 4
    %v211 = vadd.f32 %v209, %v210
    %v212 = vrot.slane %v211, 2
    %v213 = vadd.f32 %v211, %v212
    %v214 = vrot.slane %v213, 1
    %v215 = vadd.f32 %v213, %v214
    %v216 = vsel %vm110, %v86, 0.0
    %v217 = vsel %vm110, %v87, 0.0
    %v218 = vadd.f32 %v216, %v217
    %v219 = vsel %vm110, %v88, 0.0
    %v220 = vadd.f32 %v218, %v219
    %v221 = vsel %vm110, %v89, 0.0
    %v222 = vadd.f32 %v220, %v221
    %v223 = vsel %vm110, %v90, 0.0
    %v224 = vadd.f32 %v222, %v223
    %v225 = vsel %vm110, %v91, 0.0
    %v226 = vadd.f32 %v224, %v225
    %v227 = vsel %vm110, %v92, 0.0
    %v228 = vadd.f32 %v226, %v227
    %v229 = vsel %vm110, %v93, 0.0
    %v230 = vadd.f32 %v228, %v229
    %v231 = vrot.slane %v230, 4
    %v232 = vadd.f32 %v230, %v231
    %v233 = vrot.slane %v232, 2
    %v234 = vadd.f32 %v232, %v233
    %v235 = vrot.slane %v234, 1
    %v236 = vadd.f32 %v234, %v235
    %v237 = vsel %vm110, %v94, 0.0
    %v238 = vsel %vm110, %v95, 0.0
    %v239 = vadd.f32 %v237, %v238
    %v240 = vsel %vm110, %v96, 0.0
    %v241 = vadd.f32 %v239, %v240
    %v242 = vsel %vm110, %v97, 0.0
    %v243 = vadd.f32 %v241, %v242
    %v244 = vsel %vm110, %v98, 0.0
    %v245 = vadd.f32 %v243, %v244
    %v246 = vsel %vm110, %v99, 0.0
    %v247 = vadd.f32 %v245, %v246
    %v248 = vsel %vm110, %v100, 0.0
    %v249 = vadd.f32 %v247, %v248
    %v250 = vsel %vm110, %v101, 0.0
    %v251 = vadd.f32 %v249, %v250
    %v252 = vrot.slane %v251, 4
    %v253 = vadd.f32 %v251, %v252
    %v254 = vrot.slane %v253, 2
    %v255 = vadd.f32 %v253, %v254
    %v256 = vrot.slane %v255, 1
    %v257 = vadd.f32 %v255, %v256
    %v258 = vsel %vm110, %v102, 0.0
    %v259 = vsel %vm110, %v103, 0.0
    %v260 = vadd.f32 %v258, %v259
    %v261 = vsel %vm110, %v104, 0.0
    %v262 = vadd.f32 %v260, %v261
    %v263 = vsel %vm110, %v105, 0.0
    %v264 = vadd.f32 %v262, %v263
    %v265 = vsel %vm110, %v106, 0.0
    %v266 = vadd.f32 %v264, %v265
    %v267 = vsel %vm110, %v107, 0.0
    %v268 = vadd.f32 %v266, %v267
    %v269 = vsel %vm110, %v108, 0.0
    %v270 = vadd.f32 %v268, %v269
    %v271 = vsel %vm110, %v109, 0.0
    %v272 = vadd.f32 %v270, %v271
    %v273 = vrot.slane %v272, 4
    %v274 = vadd.f32 %v272, %v273
    %v275 = vrot.slane %v274, 2
    %v276 = vadd.f32 %v274, %v275
    %v277 = vrot.slane %v276, 1
    %v278 = vadd.f32 %v276, %v277
    %v279 = vmul.f32 %v131, 0.015625
    %v280 = vmul.f32 %v152, 0.015625
    %v281 = vmul.f32 %v173, 0.015625
    %v282 = vmul.f32 %v194, 0.015625
    %v283 = vmul.f32 %v215, 0.015625
    %v284 = vmul.f32 %v236, 0.015625
    %v285 = vmul.f32 %v257, 0.015625
    %v286 = vmul.f32 %v278, 0.015625
    %vm295 = vcmask 1041409
    %v296 = vsel %vm295, %v280, %v279
    %vm297 = vcmask 1042434
    %v298 = vsel %vm297, %v281, %v296
    %vm299 = vcmask 1043459
    %v300 = vsel %vm299, %v282, %v298
    %vm301 = vcmask 1044484
    %v302 = vsel %vm301, %v283, %v300
    %vm303 = vcmask 1045509
    %v304 = vsel %vm303, %v284, %v302
    %vm305 = vcmask 1046534
    %v306 = vsel %vm305, %v285, %v304
    %vm307 = vcmask 1047559
    %v308 = vsel %vm307, %v286, %v306
    %310 = vst.msk [vmem:[#allocation7] sm:$0xff] %vm110, %v308
    %v311 = vld [vmem:[#allocation5] sm:$0xff]
    %v312 = vld [vmem:[#allocation5 + $0x8] sm:$0xff]
    %v313 = vld [vmem:[#allocation5 + $0x10] sm:$0xff]
    %v314 = vld [vmem:[#allocation5 + $0x18] sm:$0xff]
    %v315 = vld [vmem:[#allocation5 + $0x20] sm:$0xff]
    %v316 = vld [vmem:[#allocation5 + $0x28] sm:$0xff]
    %v317 = vld [vmem:[#allocation5 + $0x30] sm:$0xff]
    %v318 = vld [vmem:[#allocation5 + $0x38] sm:$0xff]
    %v319 = vld [vmem:[%s2] sm:$0x1]
    %v321 = vlaneseq
    %v322 = vshrl.u32 %v321, 7
    %v323 = vsub.s32 0, %v322
    %v324 = vrot.slane %v319, %v323
    %v326 = vsel %vm110, %v308, 0
    %328 = vmatprep.subr.mxu0 0.0
    %329 = vmatpush1.msra.mxu0 0.0
    %330 = vmatprep.subr.mxu0 0.0
    %331 = vmatpush1.msra.mxu0 0.0
    %332 = vmatprep.subr.mxu0 0.0
    %333 = vmatpush1.msra.mxu0 0.0
    %334 = vmatprep.subr.mxu0 0.0
    %335 = vmatpush1.msra.mxu0 0.0
    %336 = vmatprep.subr.mxu0 0.0
    %337 = vmatpush1.msra.mxu0 0.0
    %338 = vmatprep.subr.mxu0 0.0
    %339 = vmatpush1.msra.mxu0 0.0
    %340 = vmatprep.subr.mxu0 0.0
    %341 = vmatpush1.msra.mxu0 0.0
    %342 = vmatprep.subr.mxu0 0.0
    %343 = vmatpush1.msra.mxu0 0.0
    %344 = vmatprep.subr.mxu0 0.0
    %345 = vmatpush1.msra.mxu0 %v318
    %346 = vmatprep.subr.mxu0 0.0
    %347 = vmatpush1.msra.mxu0 %v317
    %348 = vmatprep.subr.mxu0 0.0
    %349 = vmatpush1.msra.mxu0 %v316
    %350 = vmatprep.subr.mxu0 0.0
    %351 = vmatpush1.msra.mxu0 %v315
    %352 = vmatprep.subr.mxu0 0.0
    %353 = vmatpush1.msra.mxu0 %v314
    %354 = vmatprep.subr.mxu0 0.0
    %355 = vmatpush1.msra.mxu0 %v313
    %356 = vmatprep.subr.mxu0 0.0
    %357 = vmatpush1.msra.mxu0 %v312
    %358 = vmatprep.subr.mxu0 0.0
    %359 = vmatpush1.msra.mxu0 %v311
    %360 = vmatprep.subr.mxu0 0.0
    %361 = vmatpush2.msra.mxu0 0.0
    %362 = vmatprep.subr.mxu0 0.0
    %363 = vmatpush2.msra.mxu0 0.0
    %364 = vmatprep.subr.mxu0 0.0
    %365 = vmatpush2.msra.mxu0 0.0
    %366 = vmatprep.subr.mxu0 0.0
    %367 = vmatpush2.msra.mxu0 0.0
    %368 = vmatprep.subr.mxu0 0.0
    %369 = vmatpush2.msra.mxu0 0.0
    %370 = vmatprep.subr.mxu0 0.0
    %371 = vmatpush2.msra.mxu0 0.0
    %372 = vmatprep.subr.mxu0 0.0
    %373 = vmatpush2.msra.mxu0 0.0
    %374 = vmatprep.subr.mxu0 0.0
    %375 = vmatpush2.msra.mxu0 0.0
    %376 = vmatprep.subr.mxu0 0.0
    %377 = vmatpush2.msra.mxu0 0.0
    %378 = vmatprep.subr.mxu0 0.0
    %379 = vmatpush2.msra.mxu0 0.0
    %380 = vmatprep.subr.mxu0 0.0
    %381 = vmatpush2.msra.mxu0 0.0
    %382 = vmatprep.subr.mxu0 0.0
    %383 = vmatpush2.msra.mxu0 0.0
    %384 = vmatprep.subr.mxu0 0.0
    %385 = vmatpush2.msra.mxu0 0.0
    %386 = vmatprep.subr.mxu0 0.0
    %387 = vmatpush2.msra.mxu0 0.0
    %388 = vmatprep.subr.mxu0 0.0
    %389 = vmatpush2.msra.mxu0 0.0
    %390 = vmatprep.subr.mxu0 0.0
    %391 = vmatpush2.msra.mxu0 0.0
    %392 = vmatprep.mubr.f32.mxu0 0.0
    %393 = vmatmul.mubr.f32.gmra.mxu0 %v326
    %v394 = vpop.f32.mrf.mxu0
    %v395 = vadd.f32 %v324, %v394
    %v396 = vpop.f32.mrf.mxu0
    %397 = vdwg.mxu0
    %398 = vst [vmem:[#allocation8] sm:$0xff] %v395
    // Predicated region
    $region22: #{tpu_custom_call.1} parent=1 // pred_check
      _
    $region23: #{tpu_custom_call.1} parent=1 // pred_check_branch
      %400 = sbr.rel (0) target = $region25
    $region24: #{tpu_custom_call.1} parent=1 // pred_region
      %s402 = ssub.s32 128, 128
      %403 = vsyncadd [#allocation4], %s402
      %s405 = sshll.u32 [#allocation7], 4
      %s406 = int_to_ptr.vmem [resolvable:$true] %s405
      %408 = dma.vmem_to_hbm [thread:$0]  %s406, 128, %s3, [#allocation4]
    $region25: #{tpu_custom_call.1} parent=1 // pred_fallthru
      _
    // Predicated region
    $region26: #{tpu_custom_call.1} parent=1 // pred_check
      _
    $region27: #{tpu_custom_call.1} parent=1 // pred_check_branch
      %410 = sbr.rel (0) target = $region29
    $region28: #{tpu_custom_call.1} parent=1 // pred_region
      %s412 = ssub.s32 128, 128
      %413 = vsyncadd [#allocation9], %s412
      %s415 = sshll.u32 [#allocation8], 4
      %s416 = int_to_ptr.vmem [resolvable:$true] %s415
      %418 = dma.vmem_to_hbm [thread:$0]  %s416, 128, %s4, [#allocation9]
    $region29: #{tpu_custom_call.1} parent=1 // pred_fallthru
      _
    // Predicated region
    $region30: #{tpu_custom_call.1} parent=1 // pred_check
      _
    $region31: #{tpu_custom_call.1} parent=1 // pred_check_branch
      %420 = sbr.rel (0) target = $region33
    $region32: #{tpu_custom_call.1} parent=1 // pred_region
      %421 = dma.done [#allocation4], 128
    $region33: #{tpu_custom_call.1} parent=1 // pred_fallthru
      _
    // Predicated region
    $region34: #{tpu_custom_call.1} parent=1 // pred_check
      _
    $region35: #{tpu_custom_call.1} parent=1 // pred_check_branch
      %423 = sbr.rel (0) target = $region37
    $region36: #{tpu_custom_call.1} parent=1 // pred_region
      %424 = dma.done [#allocation9], 128
    $region37: #{tpu_custom_call.1} parent=1 // pred_fallthru
      _
    %425 = vsyncpa [#allocation3], 1
    %426 = vsyncpa [#allocation6], 1
    %427 = vsyncpa [#allocation4], 1
    %428 = vsyncpa [#allocation9], 1

</llo_original>
